<compile_context>
chip_gen: v5e
topology: v5e:2x2
jax: 0.10.0
libtpu: 0.0.40
codegen_flags: <defaults>
</compile_context>

<pallas_src>
import functools

import jax
import jax.numpy as jnp
from jax.experimental import pallas as pl
from jax.experimental.pallas import tpu as pltpu


def _round_up(x, m):
    return (x + m - 1) // m * m


def _choose_row_tile(n_rows, row_bytes, budget=8 << 20):
    """Largest multiple-of-16 row tile under a VMEM budget with >=2 grid steps."""
    for nb in (1024, 512, 256, 128, 64, 32, 16):
        if 2 * nb * row_bytes > budget:      # double-buffered row streams
            continue
        if n_rows >= 2 * nb:                 # keep both v7x TensorCores busy
            return nb
    return 16


def _vae_kernel(x_ref, eps_ref,
                w1_ref, b1_ref,
                whead_ref, bhead_ref,
                w2_ref, b2_ref,
                w3_ref, b3_ref,
                out_ref, *, z_dim):
    x = x_ref[...]                                   # [Nb, D]  bf16 (no cast needed)

    # ----- encoder trunk: Linear -> ReLU (bf16 MXU operands, f32 accumulate) -----
    h = jnp.dot(x, w1_ref[...], preferred_element_type=jnp.float32) + b1_ref[...]
    h = jnp.maximum(h, 0.0)                          # [Nb, Hp] f32

    # ----- fused mu|sigma head: one [Hp, 2Z] matmul (already packed mu|sigma) -----
    head = jnp.dot(h.astype(jnp.bfloat16), whead_ref[...],
                   preferred_element_type=jnp.float32) + bhead_ref[...]
    mu = head[:, :z_dim]
    sigma = head[:, z_dim:]

    # ----- reparameterization: latent = mu + exp(sigma / 2) * eps  (f32 VPU/EUP) -----
    eps = eps_ref[...].astype(jnp.float32)           # [Nb, Z]
    latent = mu + jnp.exp(sigma * 0.5) * eps

    # ----- decoder: Linear -> ReLU -> Linear (recon columns zero-padded to Dp) -----
    d = jnp.dot(latent.astype(jnp.bfloat16), w2_ref[...],
                preferred_element_type=jnp.float32) + b2_ref[...]
    d = jnp.maximum(d, 0.0)
    recon = jnp.dot(d.astype(jnp.bfloat16), w3_ref[...],
                    preferred_element_type=jnp.float32) + b3_ref[...]

    # Single lane-dense store: [Nb, W] = mu | sigma | recon | zero-pad (W % 128 == 0).
    out_ref[...] = jnp.concatenate([head, recon], axis=-1)


def vae_forward(motion, eps, params):
    """motion: [B, T, D] f32, eps: [B, T, Z] f32 (standard-normal noise)."""
    B, T, D = motion.shape
    Z = eps.shape[-1]
    N = B * T

    (w1, b1, wmu, bmu, wsig, bsig, w2, b2, w3, b3) = params
    H = w1.shape[1]
    Hp = _round_up(H, 128)          # lane-dense hidden width
    Z2 = 2 * Z
    W = _round_up(Z2 + D, 128)      # lane-dense packed output width
    Dp = W - Z2                     # zero-padded recon width

    # ---- weight prep: fuse mu/sigma heads, zero-pad H and recon columns, bf16 ----
    w1_p = jnp.pad(w1, ((0, 0), (0, Hp - H))).astype(jnp.bfloat16)          # [D, Hp]
    b1_p = jnp.pad(b1, ((0, 0), (0, Hp - H)))                               # [1, Hp]
    whead = jnp.concatenate([wmu, wsig], axis=1)                            # [H, 2Z]
    whead_p = jnp.pad(whead, ((0, Hp - H), (0, 0))).astype(jnp.bfloat16)    # [Hp, 2Z]
    bhead = jnp.concatenate([bmu, bsig], axis=1)                            # [1, 2Z]
    w2_p = jnp.pad(w2, ((0, 0), (0, Hp - H))).astype(jnp.bfloat16)          # [Z, Hp]
    b2_p = jnp.pad(b2, ((0, 0), (0, Hp - H)))                               # [1, Hp]
    w3_p = jnp.pad(w3, ((0, Hp - H), (0, Dp - D))).astype(jnp.bfloat16)     # [Hp, Dp]
    b3_p = jnp.pad(b3, ((0, 0), (0, Dp - D)))                               # [1, Dp]

    # ---- adaptive row tiling (bf16 inputs, f32 packed output) ----
    row_bytes = 2 * D + 2 * Z + 4 * W
    Nb = _choose_row_tile(N, row_bytes)
    N_pad = _round_up(N, Nb)

    x2d = motion.reshape(N, D).astype(jnp.bfloat16)
    eps2d = eps.reshape(N, Z).astype(jnp.bfloat16)
    if N_pad != N:
        x2d = jnp.pad(x2d, ((0, N_pad - N), (0, 0)))
        eps2d = jnp.pad(eps2d, ((0, N_pad - N), (0, 0)))

    def row_spec(width):
        return pl.BlockSpec((Nb, width), lambda i: (i, 0))

    def const_spec(shape):
        return pl.BlockSpec(shape, lambda i, _r=len(shape): (0,) * _r)

    weight_bytes = (2 * (w1_p.size + whead_p.size + w2_p.size + w3_p.size)
                    + 4 * (b1_p.size + bhead.size + b2_p.size + b3_p.size))
    flops = 2 * N_pad * (D * Hp + Hp * Z2 + Z * Hp + Hp * Dp)
    bytes_accessed = N_pad * row_bytes + weight_bytes

    # Scoped-VMEM request: double-buffered row blocks + (double-buffered) weights
    # + f32 intermediates, with 2x headroom; clamped to v7x's 64 MiB physical.
    vmem_est = 2 * (Nb * row_bytes + weight_bytes) + 6 * Nb * Hp * 4
    vmem_limit = int(min(max(2 * vmem_est, 16 << 20), 64 << 20))

    packed = pl.pallas_call(
        functools.partial(_vae_kernel, z_dim=Z),
        out_shape=jax.ShapeDtypeStruct((N_pad, W), jnp.float32),
        grid=(N_pad // Nb,),
        in_specs=[
            row_spec(D),                 # x    (bf16)
            row_spec(Z),                 # eps  (bf16)
            const_spec(w1_p.shape), const_spec(b1_p.shape),
            const_spec(whead_p.shape), const_spec(bhead.shape),
            const_spec(w2_p.shape), const_spec(b2_p.shape),
            const_spec(w3_p.shape), const_spec(b3_p.shape),
        ],
        out_specs=row_spec(W),
        compiler_params=pltpu.CompilerParams(
            dimension_semantics=("parallel",),
            vmem_limit_bytes=vmem_limit),
        cost_estimate=pl.CostEstimate(
            flops=int(flops),
            transcendentals=int(N_pad * Z),
            bytes_accessed=int(bytes_accessed)),
    )(x2d, eps2d, w1_p, b1_p, whead_p, bhead, w2_p, b2_p, w3_p, b3_p)

    packed = packed[:N]
    mu = packed[:, :Z]
    sigma = packed[:, Z:Z2]
    recon = packed[:, Z2:Z2 + D]
    return {
        'mu': mu.reshape(B, T, Z),
        'sigma': sigma.reshape(B, T, Z),
        'recon_motion': recon.reshape(B, T, D),
    }


def init_params(key, d_in, hidden, z):
    ks = jax.random.split(key, 5)

    def lin(k, fan_in, fan_out):
        w = jax.random.normal(k, (fan_in, fan_out), jnp.float32) * (1.0 / jnp.sqrt(fan_in))
        b = jnp.zeros((1, fan_out), jnp.float32)
        return w, b

    w1, b1 = lin(ks[0], d_in, hidden)       # encoder trunk
    wmu, bmu = lin(ks[1], hidden, z)        # mu head
    wsig, bsig = lin(ks[2], hidden, z)      # sigma (log-var) head
    w2, b2 = lin(ks[3], z, hidden)          # decoder trunk
    w3, b3 = lin(ks[4], hidden, d_in)       # decoder output
    return (w1, b1, wmu, bmu, wsig, bsig, w2, b2, w3, b3)


def _reference(motion, eps, params):
    # Pure-JAX reference using the same bf16-operand / f32-accumulate matmuls
    # and the same bf16-rounded inputs the kernel consumes.
    B, T, D = motion.shape
    Z = eps.shape[-1]
    x = motion.reshape(B * T, D).astype(jnp.bfloat16)
    e = eps.reshape(B * T, Z).astype(jnp.bfloat16).astype(jnp.float32)
    (w1, b1, wmu, bmu, wsig, bsig, w2, b2, w3, b3) = params

    def mm(a, w):
        return jnp.dot(a.astype(jnp.bfloat16), w.astype(jnp.bfloat16),
                       preferred_element_type=jnp.float32)

    h = jnp.maximum(mm(x, w1) + b1, 0.0)
    mu = mm(h, wmu) + bmu
    sigma = mm(h, wsig) + bsig
    latent = mu + jnp.exp(sigma / 2) * e
    d = jnp.maximum(mm(latent, w2) + b2, 0.0)
    recon = mm(d, w3) + b3
    return {
        'mu': mu.reshape(B, T, Z),
        'sigma': sigma.reshape(B, T, Z),
        'recon_motion': recon.reshape(B, T, D),
    }


if __name__ == "__main__":
    key = jax.random.PRNGKey(0)
    k_motion, k_eps, k_params = jax.random.split(key, 3)

    B, T, D = 2, 64, 32         # batch=2, seq=64, motion features=32
    HIDDEN, Z = 64, 16

    motion = jax.random.normal(k_motion, (B, T, D), jnp.float32)
    # torch.randn_like(mu) equivalent: deterministic standard-normal noise.
    eps = jax.random.normal(k_eps, (B, T, Z), jnp.float32)
    params = init_params(k_params, D, HIDDEN, Z)

    out = vae_forward(motion, eps, params)
    jax.block_until_ready(out)

    ref = _reference(motion, eps, params)
    for name in ('mu', 'sigma', 'recon_motion'):
        assert jnp.allclose(out[name], ref[name], atol=1e-2, rtol=1e-2), name

    print("KERNEL_OK")
</pallas_src>

<mosaic_0001>
module attributes {stable_mosaic.version = 11 : i64} {
  func.func @_vae_kernel(%arg0: i32, %arg1: memref<64x32xbf16, #tpu.memory_space<vmem>>, %arg2: memref<64x16xbf16, #tpu.memory_space<vmem>>, %arg3: memref<32x128xbf16, #tpu.memory_space<vmem>>, %arg4: memref<1x128xf32, #tpu.memory_space<vmem>>, %arg5: memref<128x32xbf16, #tpu.memory_space<vmem>>, %arg6: memref<1x32xf32, #tpu.memory_space<vmem>>, %arg7: memref<16x128xbf16, #tpu.memory_space<vmem>>, %arg8: memref<1x128xf32, #tpu.memory_space<vmem>>, %arg9: memref<128x96xbf16, #tpu.memory_space<vmem>>, %arg10: memref<1x96xf32, #tpu.memory_space<vmem>>, %arg11: memref<64x128xf32, #tpu.memory_space<vmem>>) attributes {dimension_semantics = [#tpu.dimension_semantics<parallel>], iteration_bounds = array<i64: 2>, scalar_prefetch = 0 : i64, scratch_operands = 0 : i64, tpu.core_type = #tpu.core_type<tc>, window_params = [{transform_indices = @transform_0, window_bounds = array<i64: 64, 32>}, {transform_indices = @transform_1, window_bounds = array<i64: 64, 16>}, {pipeline_mode = #tpu.pipeline_mode<synchronous>, transform_indices = @transform_2, window_bounds = array<i64: 32, 128>}, {pipeline_mode = #tpu.pipeline_mode<synchronous>, transform_indices = @transform_3, window_bounds = array<i64: 1, 128>}, {pipeline_mode = #tpu.pipeline_mode<synchronous>, transform_indices = @transform_4, window_bounds = array<i64: 128, 32>}, {pipeline_mode = #tpu.pipeline_mode<synchronous>, transform_indices = @transform_5, window_bounds = array<i64: 1, 32>}, {pipeline_mode = #tpu.pipeline_mode<synchronous>, transform_indices = @transform_6, window_bounds = array<i64: 16, 128>}, {pipeline_mode = #tpu.pipeline_mode<synchronous>, transform_indices = @transform_7, window_bounds = array<i64: 1, 128>}, {pipeline_mode = #tpu.pipeline_mode<synchronous>, transform_indices = @transform_8, window_bounds = array<i64: 128, 96>}, {pipeline_mode = #tpu.pipeline_mode<synchronous>, transform_indices = @transform_9, window_bounds = array<i64: 1, 96>}, {transform_indices = @transform_10, window_bounds = array<i64: 64, 128>}]} {
    %c0 = arith.constant 0 : index
    %c0_0 = arith.constant 0 : index
    %0 = vector.load %arg1[%c0, %c0_0] : memref<64x32xbf16, #tpu.memory_space<vmem>>, vector<64x32xbf16>
    %c0_1 = arith.constant 0 : index
    %c0_2 = arith.constant 0 : index
    %1 = vector.load %arg3[%c0_1, %c0_2] : memref<32x128xbf16, #tpu.memory_space<vmem>>, vector<32x128xbf16>
    %cst = arith.constant dense<0.000000e+00> : vector<64x128xf32>
    %2 = tpu.matmul %0, %1, %cst {dimension_numbers = #tpu.dot_dimension_numbers<[1], [0], [0], [1], [0, 0, 1, 1], [], []>} : vector<64x32xbf16>, vector<32x128xbf16>, vector<64x128xf32> -> vector<64x128xf32>
    %c0_3 = arith.constant 0 : index
    %c0_4 = arith.constant 0 : index
    %3 = vector.load %arg4[%c0_3, %c0_4] : memref<1x128xf32, #tpu.memory_space<vmem>>, vector<1x128xf32>
    %4 = vector.broadcast %3 : vector<1x128xf32> to vector<64x128xf32>
    %5 = arith.addf %2, %4 : vector<64x128xf32>
    %cst_5 = arith.constant 0.000000e+00 : f32
    %6 = vector.broadcast %cst_5 : f32 to vector<64x128xf32>
    %7 = arith.maximumf %5, %6 : vector<64x128xf32>
    %8 = arith.truncf %7 : vector<64x128xf32> to vector<64x128xbf16>
    %c0_6 = arith.constant 0 : index
    %c0_7 = arith.constant 0 : index
    %9 = vector.load %arg5[%c0_6, %c0_7] : memref<128x32xbf16, #tpu.memory_space<vmem>>, vector<128x32xbf16>
    %cst_8 = arith.constant dense<0.000000e+00> : vector<64x32xf32>
    %10 = tpu.matmul %8, %9, %cst_8 {dimension_numbers = #tpu.dot_dimension_numbers<[1], [0], [0], [1], [0, 0, 1, 1], [], []>} : vector<64x128xbf16>, vector<128x32xbf16>, vector<64x32xf32> -> vector<64x32xf32>
    %c0_9 = arith.constant 0 : index
    %c0_10 = arith.constant 0 : index
    %11 = vector.load %arg6[%c0_9, %c0_10] : memref<1x32xf32, #tpu.memory_space<vmem>>, vector<1x32xf32>
    %12 = vector.broadcast %11 : vector<1x32xf32> to vector<64x32xf32>
    %13 = arith.addf %10, %12 : vector<64x32xf32>
    %14 = vector.extract_strided_slice %13 {offsets = [0, 0], sizes = [64, 16], strides = [1, 1]} : vector<64x32xf32> to vector<64x16xf32>
    %15 = vector.extract_strided_slice %13 {offsets = [0, 16], sizes = [64, 16], strides = [1, 1]} : vector<64x32xf32> to vector<64x16xf32>
    %c0_11 = arith.constant 0 : index
    %c0_12 = arith.constant 0 : index
    %16 = vector.load %arg2[%c0_11, %c0_12] : memref<64x16xbf16, #tpu.memory_space<vmem>>, vector<64x16xbf16>
    %17 = arith.extf %16 : vector<64x16xbf16> to vector<64x16xf32>
    %cst_13 = arith.constant 5.000000e-01 : f32
    %18 = vector.broadcast %cst_13 : f32 to vector<64x16xf32>
    %19 = arith.mulf %15, %18 : vector<64x16xf32>
    %20 = math.exp %19 : vector<64x16xf32>
    %21 = arith.mulf %20, %17 : vector<64x16xf32>
    %22 = arith.addf %14, %21 : vector<64x16xf32>
    %23 = arith.truncf %22 : vector<64x16xf32> to vector<64x16xbf16>
    %c0_14 = arith.constant 0 : index
    %c0_15 = arith.constant 0 : index
    %24 = vector.load %arg7[%c0_14, %c0_15] : memref<16x128xbf16, #tpu.memory_space<vmem>>, vector<16x128xbf16>
    %cst_16 = arith.constant dense<0.000000e+00> : vector<64x128xf32>
    %25 = tpu.matmul %23, %24, %cst_16 {dimension_numbers = #tpu.dot_dimension_numbers<[1], [0], [0], [1], [0, 0, 1, 1], [], []>} : vector<64x16xbf16>, vector<16x128xbf16>, vector<64x128xf32> -> vector<64x128xf32>
    %c0_17 = arith.constant 0 : index
    %c0_18 = arith.constant 0 : index
    %26 = vector.load %arg8[%c0_17, %c0_18] : memref<1x128xf32, #tpu.memory_space<vmem>>, vector<1x128xf32>
    %27 = vector.broadcast %26 : vector<1x128xf32> to vector<64x128xf32>
    %28 = arith.addf %25, %27 : vector<64x128xf32>
    %cst_19 = arith.constant 0.000000e+00 : f32
    %29 = vector.broadcast %cst_19 : f32 to vector<64x128xf32>
    %30 = arith.maximumf %28, %29 : vector<64x128xf32>
    %31 = arith.truncf %30 : vector<64x128xf32> to vector<64x128xbf16>
    %c0_20 = arith.constant 0 : index
    %c0_21 = arith.constant 0 : index
    %32 = vector.load %arg9[%c0_20, %c0_21] : memref<128x96xbf16, #tpu.memory_space<vmem>>, vector<128x96xbf16>
    %cst_22 = arith.constant dense<0.000000e+00> : vector<64x96xf32>
    %33 = tpu.matmul %31, %32, %cst_22 {dimension_numbers = #tpu.dot_dimension_numbers<[1], [0], [0], [1], [0, 0, 1, 1], [], []>} : vector<64x128xbf16>, vector<128x96xbf16>, vector<64x96xf32> -> vector<64x96xf32>
    %c0_23 = arith.constant 0 : index
    %c0_24 = arith.constant 0 : index
    %34 = vector.load %arg10[%c0_23, %c0_24] : memref<1x96xf32, #tpu.memory_space<vmem>>, vector<1x96xf32>
    %35 = vector.broadcast %34 : vector<1x96xf32> to vector<64x96xf32>
    %36 = arith.addf %33, %35 : vector<64x96xf32>
    %37 = tpu.concatenate %13, %36 in 1 : vector<64x32xf32>, vector<64x96xf32> -> vector<64x128xf32>
    %c0_25 = arith.constant 0 : index
    %c0_26 = arith.constant 0 : index
    %38 = vector.load %arg11[%c0_25, %c0_26] : memref<64x128xf32, #tpu.memory_space<vmem>>, vector<64x128xf32>
    tpu.vector_store %arg11[%c0_25, %c0_26], %37 {strides = array<i32>} : memref<64x128xf32, #tpu.memory_space<vmem>>, vector<64x128xf32>,
    return
  }
  func.func @transform_0(%arg0: i32) -> (i32, i32) {
    %c0_i32 = arith.constant 0 : i32
    %c0_i32_0 = arith.constant 0 : i32
    return %arg0, %c0_i32 : i32, i32
  }
  func.func @transform_1(%arg0: i32) -> (i32, i32) {
    %c0_i32 = arith.constant 0 : i32
    %c0_i32_0 = arith.constant 0 : i32
    return %arg0, %c0_i32 : i32, i32
  }
  func.func @transform_2(%arg0: i32) -> (i32, i32) {
    %c0_i32 = arith.constant 0 : i32
    %c0_i32_0 = arith.constant 0 : i32
    %c0_i32_1 = arith.constant 0 : i32
    return %c0_i32, %c0_i32_0 : i32, i32
  }
  func.func @transform_3(%arg0: i32) -> (i32, i32) {
    %c0_i32 = arith.constant 0 : i32
    %c0_i32_0 = arith.constant 0 : i32
    %c0_i32_1 = arith.constant 0 : i32
    return %c0_i32, %c0_i32_0 : i32, i32
  }
  func.func @transform_4(%arg0: i32) -> (i32, i32) {
    %c0_i32 = arith.constant 0 : i32
    %c0_i32_0 = arith.constant 0 : i32
    %c0_i32_1 = arith.constant 0 : i32
    return %c0_i32, %c0_i32_0 : i32, i32
  }
  func.func @transform_5(%arg0: i32) -> (i32, i32) {
    %c0_i32 = arith.constant 0 : i32
    %c0_i32_0 = arith.constant 0 : i32
    %c0_i32_1 = arith.constant 0 : i32
    return %c0_i32, %c0_i32_0 : i32, i32
  }
  func.func @transform_6(%arg0: i32) -> (i32, i32) {
    %c0_i32 = arith.constant 0 : i32
    %c0_i32_0 = arith.constant 0 : i32
    %c0_i32_1 = arith.constant 0 : i32
    return %c0_i32, %c0_i32_0 : i32, i32
  }
  func.func @transform_7(%arg0: i32) -> (i32, i32) {
    %c0_i32 = arith.constant 0 : i32
    %c0_i32_0 = arith.constant 0 : i32
    %c0_i32_1 = arith.constant 0 : i32
    return %c0_i32, %c0_i32_0 : i32, i32
  }
  func.func @transform_8(%arg0: i32) -> (i32, i32) {
    %c0_i32 = arith.constant 0 : i32
    %c0_i32_0 = arith.constant 0 : i32
    %c0_i32_1 = arith.constant 0 : i32
    return %c0_i32, %c0_i32_0 : i32, i32
  }
  func.func @transform_9(%arg0: i32) -> (i32, i32) {
    %c0_i32 = arith.constant 0 : i32
    %c0_i32_0 = arith.constant 0 : i32
    %c0_i32_1 = arith.constant 0 : i32
    return %c0_i32, %c0_i32_0 : i32, i32
  }
  func.func @transform_10(%arg0: i32) -> (i32, i32) {
    %c0_i32 = arith.constant 0 : i32
    %c0_i32_0 = arith.constant 0 : i32
    return %arg0, %c0_i32 : i32, i32
  }
}

</mosaic_0001>

<llo_original>
// kernel: tpu_custom_call.1
$region0: #{tpu_custom_call.1}
  #allocation0 [shape = 'u32[]', space=smem, size = 0x4, offset = 0x4, fixed_abs, tag = 'smem constant byte address 0x4 - core index']
  #allocation1 [shape = 'u32[72,128]{1,0:T(1,128)}', space=vmem, size = 0x9000, scoped, tag = 'internal scratch']
  %s0 = inlined_call_operand.vmem [shape: bf16[128,32], index: 0, kind: input, shape index: {}]
  %s1 = inlined_call_operand.vmem [shape: bf16[128,16], index: 1, kind: input, shape index: {}]
  %s2 = inlined_call_operand.vmem [shape: bf16[32,128], index: 2, kind: input, shape index: {}]
  %s3 = inlined_call_operand.vmem [shape: f32[1,128], index: 3, kind: input, shape index: {}]
  %s4 = inlined_call_operand.vmem [shape: bf16[128,32], index: 4, kind: input, shape index: {}]
  %s5 = inlined_call_operand.vmem [shape: f32[1,32], index: 5, kind: input, shape index: {}]
  %s6 = inlined_call_operand.vmem [shape: bf16[16,128], index: 6, kind: input, shape index: {}]
  %s7 = inlined_call_operand.vmem [shape: f32[1,128], index: 7, kind: input, shape index: {}]
  %s8 = inlined_call_operand.vmem [shape: bf16[128,96], index: 8, kind: input, shape index: {}]
  %s9 = inlined_call_operand.vmem [shape: f32[1,96], index: 9, kind: input, shape index: {}]
  %s10 = inlined_call_operand.hbm [shape: f32[128,128], index: 10, kind: output, shape index: {}]
  %s11 = sld [smem:[#allocation0]]
  $region73: #{tpu_custom_call.1} parent=0
    _
  %s13 = ssub.s32 1, %s11
  %s14 = scalar_select 0, %s13, %s11
  $region1: #{tpu_custom_call.1} parent=0
    #allocation2 [shape = 'u8[65536]{0}', space=vmem, size = 0x10000, scoped, tag = 'output window, operand 0']
    #allocation3 [shape = 's32[2]{0}', space=sflag, size = 0x8, scoped, tag = 'scoped memory for tpu_custom_call.1']
    %15 = vsyncpa [#allocation3], 0
    %s16 = scalar_lea.sflag [#allocation3], 1
    %17 = vsyncpa %s16, 0
    loop: start=0, step=1, limit=4
    $region2: #{tpu_custom_call.1} parent=1 // loop_pre_header
      _
    $region3: #{tpu_custom_call.1} parent=1 // loop_header
      %s19 = sphi 0, %s23
      %p20 = scmp.ge.s32.totalorder %s19, 4
      %s29 = sphi 0, %s31
      %s32 = sphi 0, %s29
      %s33 = sphi 0, %s32
      %s49 = sphi 0, %s33
      %s55 = sphi 0, %s57
      %s58 = sphi 0, %s55
      %s59 = sphi 0, %s58
      %s75 = sphi 0, %s59
      %s79 = sphi 0, %s79
      %s81 = sphi 0, %s79
      %s82 = sphi 0, %s81
      %s96 = sphi 0, %s82
      %s100 = sphi 0, %s100
      %s102 = sphi 0, %s100
      %s103 = sphi 0, %s102
      %s117 = sphi 0, %s103
      %s121 = sphi 0, %s121
      %s123 = sphi 0, %s121
      %s124 = sphi 0, %s123
      %s138 = sphi 0, %s124
      %s142 = sphi 0, %s142
      %s144 = sphi 0, %s142
      %s145 = sphi 0, %s144
      %s159 = sphi 0, %s145
      %s163 = sphi 0, %s163
      %s165 = sphi 0, %s163
      %s166 = sphi 0, %s165
      %s180 = sphi 0, %s166
      %s184 = sphi 0, %s184
      %s186 = sphi 0, %s184
      %s187 = sphi 0, %s186
      %s201 = sphi 0, %s187
      %s205 = sphi 0, %s205
      %s207 = sphi 0, %s205
      %s208 = sphi 0, %s207
      %s222 = sphi 0, %s208
      %s226 = sphi 0, %s226
      %s228 = sphi 0, %s226
      %s229 = sphi 0, %s228
      %s243 = sphi 0, %s229
      %s249 = sphi 0, %s251
      %s252 = sphi 0, %s249
      %s253 = sphi 0, %s252
      %s269 = sphi 0, %s253
    $region4: #{tpu_custom_call.1} parent=1 // loop_header_branch
      %22 = sbr.rel (%p20) target = $region8
    $region5: #{tpu_custom_call.1} parent=1 // loop_body
      %s24 = ssub.s32 %s19, 1
      %s25 = ssub.s32 %s19, 2
      %s26 = sadd.s32 %s19, 1
      %s27 = ssub.s32 %s19, %s26
      %p28 = scmp.eq.s32.totalorder %s27, 0
      %s30 = sadd.s32 %s29, 1
      %s31 = scalar_select %p28, %s29, %s30
      %p34 = pneg %p28
      %p35 = scmp.eq.s32.totalorder %s19, 1
      %p36 = por %p34, %p35
      %p37 = scmp.ne.s32.totalorder %s29, %s32
      %p38 = scmp.eq.s32.totalorder %s19, 0
      %p39 = por %p37, %p38
      %p40 = scmp.ne.s32.totalorder %s29, %s32
      %p41 = scmp.eq.s32.totalorder %s24, 1
      %p42 = por %p40, %p41
      %p43 = scmp.ne.s32.totalorder %s32, %s33
      %p44 = scmp.eq.s32.totalorder %s24, 0
      %p45 = por %p43, %p44
      %p46 = scmp.ne.s32.totalorder %s32, %s33
      %p47 = scmp.eq.s32.totalorder %s25, 1
      %p48 = por %p46, %p47
      %p50 = scmp.ne.s32.totalorder %s33, %s49
      %p51 = scmp.eq.s32.totalorder %s25, 0
      %p52 = por %p50, %p51
      %s53 = ssub.s32 %s19, %s26
      %p54 = scmp.eq.s32.totalorder %s53, 0
      %s56 = sadd.s32 %s55, 1
      %s57 = scalar_select %p54, %s55, %s56
      %p60 = pneg %p54
      %p61 = scmp.eq.s32.totalorder %s19, 1
      %p62 = por %p60, %p61
      %p63 = scmp.ne.s32.totalorder %s55, %s58
      %p64 = scmp.eq.s32.totalorder %s19, 0
      %p65 = por %p63, %p64
      %p66 = scmp.ne.s32.totalorder %s55, %s58
      %p67 = scmp.eq.s32.totalorder %s24, 1
      %p68 = por %p66, %p67
      %p69 = scmp.ne.s32.totalorder %s58, %s59
      %p70 = scmp.eq.s32.totalorder %s24, 0
      %p71 = por %p69, %p70
      %p72 = scmp.ne.s32.totalorder %s58, %s59
      %p73 = scmp.eq.s32.totalorder %s25, 1
      %p74 = por %p72, %p73
      %p76 = scmp.ne.s32.totalorder %s59, %s75
      %p77 = scmp.eq.s32.totalorder %s25, 0
      %p78 = por %p76, %p77
      %s80 = sadd.s32 %s79, 1
      %p83 = scmp.eq.s32.totalorder %s19, 1
      %p84 = scmp.ne.s32.totalorder %s79, %s81
      %p85 = scmp.eq.s32.totalorder %s19, 0
      %p86 = por %p84, %p85
      %p87 = scmp.ne.s32.totalorder %s79, %s81
      %p88 = scmp.eq.s32.totalorder %s24, 1
      %p89 = por %p87, %p88
      %p90 = scmp.ne.s32.totalorder %s81, %s82
      %p91 = scmp.eq.s32.totalorder %s24, 0
      %p92 = por %p90, %p91
      %p93 = scmp.ne.s32.totalorder %s81, %s82
      %p94 = scmp.eq.s32.totalorder %s25, 1
      %p95 = por %p93, %p94
      %p97 = scmp.ne.s32.totalorder %s82, %s96
      %p98 = scmp.eq.s32.totalorder %s25, 0
      %p99 = por %p97, %p98
      %s101 = sadd.s32 %s100, 1
      %p104 = scmp.eq.s32.totalorder %s19, 1
      %p105 = scmp.ne.s32.totalorder %s100, %s102
      %p106 = scmp.eq.s32.totalorder %s19, 0
      %p107 = por %p105, %p106
      %p108 = scmp.ne.s32.totalorder %s100, %s102
      %p109 = scmp.eq.s32.totalorder %s24, 1
      %p110 = por %p108, %p109
      %p111 = scmp.ne.s32.totalorder %s102, %s103
      %p112 = scmp.eq.s32.totalorder %s24, 0
      %p113 = por %p111, %p112
      %p114 = scmp.ne.s32.totalorder %s102, %s103
      %p115 = scmp.eq.s32.totalorder %s25, 1
      %p116 = por %p114, %p115
      %p118 = scmp.ne.s32.totalorder %s103, %s117
      %p119 = scmp.eq.s32.totalorder %s25, 0
      %p120 = por %p118, %p119
      %s122 = sadd.s32 %s121, 1
      %p125 = scmp.eq.s32.totalorder %s19, 1
      %p126 = scmp.ne.s32.totalorder %s121, %s123
      %p127 = scmp.eq.s32.totalorder %s19, 0
      %p128 = por %p126, %p127
      %p129 = scmp.ne.s32.totalorder %s121, %s123
      %p130 = scmp.eq.s32.totalorder %s24, 1
      %p131 = por %p129, %p130
      %p132 = scmp.ne.s32.totalorder %s123, %s124
      %p133 = scmp.eq.s32.totalorder %s24, 0
      %p134 = por %p132, %p133
      %p135 = scmp.ne.s32.totalorder %s123, %s124
      %p136 = scmp.eq.s32.totalorder %s25, 1
      %p137 = por %p135, %p136
      %p139 = scmp.ne.s32.totalorder %s124, %s138
      %p140 = scmp.eq.s32.totalorder %s25, 0
      %p141 = por %p139, %p140
      %s143 = sadd.s32 %s142, 1
      %p146 = scmp.eq.s32.totalorder %s19, 1
      %p147 = scmp.ne.s32.totalorder %s142, %s144
      %p148 = scmp.eq.s32.totalorder %s19, 0
      %p149 = por %p147, %p148
      %p150 = scmp.ne.s32.totalorder %s142, %s144
      %p151 = scmp.eq.s32.totalorder %s24, 1
      %p152 = por %p150, %p151
      %p153 = scmp.ne.s32.totalorder %s144, %s145
      %p154 = scmp.eq.s32.totalorder %s24, 0
      %p155 = por %p153, %p154
      %p156 = scmp.ne.s32.totalorder %s144, %s145
      %p157 = scmp.eq.s32.totalorder %s25, 1
      %p158 = por %p156, %p157
      %p160 = scmp.ne.s32.totalorder %s145, %s159
      %p161 = scmp.eq.s32.totalorder %s25, 0
      %p162 = por %p160, %p161
      %s164 = sadd.s32 %s163, 1
      %p167 = scmp.eq.s32.totalorder %s19, 1
      %p168 = scmp.ne.s32.totalorder %s163, %s165
      %p169 = scmp.eq.s32.totalorder %s19, 0
      %p170 = por %p168, %p169
      %p171 = scmp.ne.s32.totalorder %s163, %s165
      %p172 = scmp.eq.s32.totalorder %s24, 1
      %p173 = por %p171, %p172
      %p174 = scmp.ne.s32.totalorder %s165, %s166
      %p175 = scmp.eq.s32.totalorder %s24, 0
      %p176 = por %p174, %p175
      %p177 = scmp.ne.s32.totalorder %s165, %s166
      %p178 = scmp.eq.s32.totalorder %s25, 1
      %p179 = por %p177, %p178
      %p181 = scmp.ne.s32.totalorder %s166, %s180
      %p182 = scmp.eq.s32.totalorder %s25, 0
      %p183 = por %p181, %p182
      %s185 = sadd.s32 %s184, 1
      %p188 = scmp.eq.s32.totalorder %s19, 1
      %p189 = scmp.ne.s32.totalorder %s184, %s186
      %p190 = scmp.eq.s32.totalorder %s19, 0
      %p191 = por %p189, %p190
      %p192 = scmp.ne.s32.totalorder %s184, %s186
      %p193 = scmp.eq.s32.totalorder %s24, 1
      %p194 = por %p192, %p193
      %p195 = scmp.ne.s32.totalorder %s186, %s187
      %p196 = scmp.eq.s32.totalorder %s24, 0
      %p197 = por %p195, %p196
      %p198 = scmp.ne.s32.totalorder %s186, %s187
      %p199 = scmp.eq.s32.totalorder %s25, 1
      %p200 = por %p198, %p199
      %p202 = scmp.ne.s32.totalorder %s187, %s201
      %p203 = scmp.eq.s32.totalorder %s25, 0
      %p204 = por %p202, %p203
      %s206 = sadd.s32 %s205, 1
      %p209 = scmp.eq.s32.totalorder %s19, 1
      %p210 = scmp.ne.s32.totalorder %s205, %s207
      %p211 = scmp.eq.s32.totalorder %s19, 0
      %p212 = por %p210, %p211
      %p213 = scmp.ne.s32.totalorder %s205, %s207
      %p214 = scmp.eq.s32.totalorder %s24, 1
      %p215 = por %p213, %p214
      %p216 = scmp.ne.s32.totalorder %s207, %s208
      %p217 = scmp.eq.s32.totalorder %s24, 0
      %p218 = por %p216, %p217
      %p219 = scmp.ne.s32.totalorder %s207, %s208
      %p220 = scmp.eq.s32.totalorder %s25, 1
      %p221 = por %p219, %p220
      %p223 = scmp.ne.s32.totalorder %s208, %s222
      %p224 = scmp.eq.s32.totalorder %s25, 0
      %p225 = por %p223, %p224
      %s227 = sadd.s32 %s226, 1
      %p230 = scmp.eq.s32.totalorder %s19, 1
      %p231 = scmp.ne.s32.totalorder %s226, %s228
      %p232 = scmp.eq.s32.totalorder %s19, 0
      %p233 = por %p231, %p232
      %p234 = scmp.ne.s32.totalorder %s226, %s228
      %p235 = scmp.eq.s32.totalorder %s24, 1
      %p236 = por %p234, %p235
      %p237 = scmp.ne.s32.totalorder %s228, %s229
      %p238 = scmp.eq.s32.totalorder %s24, 0
      %p239 = por %p237, %p238
      %p240 = scmp.ne.s32.totalorder %s228, %s229
      %p241 = scmp.eq.s32.totalorder %s25, 1
      %p242 = por %p240, %p241
      %p244 = scmp.ne.s32.totalorder %s229, %s243
      %p245 = scmp.eq.s32.totalorder %s25, 0
      %p246 = por %p244, %p245
      %s247 = ssub.s32 %s19, %s26
      %p248 = scmp.eq.s32.totalorder %s247, 0
      %s250 = sadd.s32 %s249, 1
      %s251 = scalar_select %p248, %s249, %s250
      %p254 = pneg %p248
      %p255 = scmp.eq.s32.totalorder %s19, 1
      %p256 = por %p254, %p255
      %p257 = scmp.ne.s32.totalorder %s249, %s252
      %p258 = scmp.eq.s32.totalorder %s19, 0
      %p259 = por %p257, %p258
      %p260 = scmp.ne.s32.totalorder %s249, %s252
      %p261 = scmp.eq.s32.totalorder %s24, 1
      %p262 = por %p260, %p261
      %p263 = scmp.ne.s32.totalorder %s252, %s253
      %p264 = scmp.eq.s32.totalorder %s24, 0
      %p265 = por %p263, %p264
      %p266 = scmp.ne.s32.totalorder %s252, %s253
      %p267 = scmp.eq.s32.totalorder %s25, 1
      %p268 = por %p266, %p267
      %p270 = scmp.ne.s32.totalorder %s253, %s269
      %p271 = scmp.eq.s32.totalorder %s25, 0
      %p272 = por %p270, %p271
      %p273 = scmp.le.s32.totalorder 1, %s19
      %p274 = scmp.lt.s32.totalorder %s19, 3
      %p275 = pnand %p273, %p274
      %p276 = pneg %p275
      // Predicated region
      $region9: #{tpu_custom_call.1} parent=5 // pred_check
        _
      $region10: #{tpu_custom_call.1} parent=5 // pred_check_branch
        %278 = sbr.rel (%p275) target = $region12
      $region11: #{tpu_custom_call.1} parent=5 // pred_region
        %s279 = ssub.s32 %s19, 1
        // Predicated region
        $region13: #{tpu_custom_call.1} parent=11 // pred_check
          %p280 = pneg %p92
        $region14: #{tpu_custom_call.1} parent=11 // pred_check_branch
          %282 = sbr.rel (%p280) target = $region16
        $region15: #{tpu_custom_call.1} parent=11 // pred_region
          _
        $region16: #{tpu_custom_call.1} parent=11 // pred_fallthru
          _
        // Predicated region
        $region17: #{tpu_custom_call.1} parent=11 // pred_check
          %p283 = pneg %p113
        $region18: #{tpu_custom_call.1} parent=11 // pred_check_branch
          %285 = sbr.rel (%p283) target = $region20
        $region19: #{tpu_custom_call.1} parent=11 // pred_region
          _
        $region20: #{tpu_custom_call.1} parent=11 // pred_fallthru
          _
        // Predicated region
        $region21: #{tpu_custom_call.1} parent=11 // pred_check
          %p286 = pneg %p134
        $region22: #{tpu_custom_call.1} parent=11 // pred_check_branch
          %288 = sbr.rel (%p286) target = $region24
        $region23: #{tpu_custom_call.1} parent=11 // pred_region
          _
        $region24: #{tpu_custom_call.1} parent=11 // pred_fallthru
          _
        // Predicated region
        $region25: #{tpu_custom_call.1} parent=11 // pred_check
          %p289 = pneg %p155
        $region26: #{tpu_custom_call.1} parent=11 // pred_check_branch
          %291 = sbr.rel (%p289) target = $region28
        $region27: #{tpu_custom_call.1} parent=11 // pred_region
          _
        $region28: #{tpu_custom_call.1} parent=11 // pred_fallthru
          _
        // Predicated region
        $region29: #{tpu_custom_call.1} parent=11 // pred_check
          %p292 = pneg %p176
        $region30: #{tpu_custom_call.1} parent=11 // pred_check_branch
          %294 = sbr.rel (%p292) target = $region32
        $region31: #{tpu_custom_call.1} parent=11 // pred_region
          _
        $region32: #{tpu_custom_call.1} parent=11 // pred_fallthru
          _
        // Predicated region
        $region33: #{tpu_custom_call.1} parent=11 // pred_check
          %p295 = pneg %p197
        $region34: #{tpu_custom_call.1} parent=11 // pred_check_branch
          %297 = sbr.rel (%p295) target = $region36
        $region35: #{tpu_custom_call.1} parent=11 // pred_region
          _
        $region36: #{tpu_custom_call.1} parent=11 // pred_fallthru
          _
        // Predicated region
        $region37: #{tpu_custom_call.1} parent=11 // pred_check
          %p298 = pneg %p218
        $region38: #{tpu_custom_call.1} parent=11 // pred_check_branch
          %300 = sbr.rel (%p298) target = $region40
        $region39: #{tpu_custom_call.1} parent=11 // pred_region
          _
        $region40: #{tpu_custom_call.1} parent=11 // pred_fallthru
          _
        // Predicated region
        $region41: #{tpu_custom_call.1} parent=11 // pred_check
          %p301 = pneg %p239
        $region42: #{tpu_custom_call.1} parent=11 // pred_check_branch
          %303 = sbr.rel (%p301) target = $region44
        $region43: #{tpu_custom_call.1} parent=11 // pred_region
          _
        $region44: #{tpu_custom_call.1} parent=11 // pred_fallthru
          _
      $region12: #{tpu_custom_call.1} parent=5 // pred_fallthru
        _
      %p304 = scmp.lt.s32.totalorder %s19, 2
      // Predicated region
      $region45: #{tpu_custom_call.1} parent=5 // pred_check
        %p305 = pneg %p304
      $region46: #{tpu_custom_call.1} parent=5 // pred_check_branch
        %307 = sbr.rel (%p305) target = $region48
      $region47: #{tpu_custom_call.1} parent=5 // pred_region
        // Predicated region
        $region49: #{tpu_custom_call.1} parent=47 // pred_check
          %p308 = pneg %p39
        $region50: #{tpu_custom_call.1} parent=47 // pred_check_branch
          %310 = sbr.rel (%p308) target = $region52
        $region51: #{tpu_custom_call.1} parent=47 // pred_region
          %s311 = smul.u32 8, %s19
          %p312 = scmp.lt.s32.totalorder %s311, 15
          %s313 = scalar_select %p312, %s311, 15
          %s314 = smul.addr %s313, 4
          %s315 = scalar_lea.vmem %s0, %s314
          %s316 = smul.u32 8, %s19
        $region52: #{tpu_custom_call.1} parent=47 // pred_fallthru
          _
        // Predicated region
        $region53: #{tpu_custom_call.1} parent=47 // pred_check
          %p317 = pneg %p65
        $region54: #{tpu_custom_call.1} parent=47 // pred_check_branch
          %319 = sbr.rel (%p317) target = $region56
        $region55: #{tpu_custom_call.1} parent=47 // pred_region
          %s320 = smul.u32 8, %s19
          %p321 = scmp.lt.s32.totalorder %s320, 15
          %s322 = scalar_select %p321, %s320, 15
          %s323 = smul.addr %s322, 4
          %s324 = scalar_lea.vmem %s1, %s323
          %s325 = smul.u32 8, %s19
        $region56: #{tpu_custom_call.1} parent=47 // pred_fallthru
          _
      $region48: #{tpu_custom_call.1} parent=5 // pred_fallthru
        _
      %p326 = scmp.le.s32.totalorder 1, %s19
      %p327 = scmp.lt.s32.totalorder %s19, 3
      %p328 = pnand %p326, %p327
      %p329 = pneg %p328
      // Predicated region
      $region57: #{tpu_custom_call.1} parent=5 // pred_check
        _
      $region58: #{tpu_custom_call.1} parent=5 // pred_check_branch
        %331 = sbr.rel (%p328) target = $region60
      $region59: #{tpu_custom_call.1} parent=5 // pred_region
        %s332 = ssub.s32 %s19, 1
        %s333 = smul.u32 8, %s24
        %p334 = scmp.lt.s32.totalorder %s333, 15
        %s335 = scalar_select %p334, %s333, 15
        %s336 = smul.addr %s335, 4
        %s337 = scalar_lea.vmem %s0, %s336
        %p338 = pneg %p45
        %p339 = pneg %p42
        %s340 = smul.u32 8, %s24
        %p341 = scmp.lt.s32.totalorder %s340, 15
        %s342 = scalar_select %p341, %s340, 15
        %s343 = smul.addr %s342, 4
        %s344 = scalar_lea.vmem %s1, %s343
        %p345 = pneg %p71
        %p346 = pneg %p68
        %p347 = pneg %p92
        %p348 = pneg %p89
        %p349 = pneg %p113
        %p350 = pneg %p110
        %p351 = pneg %p134
        %p352 = pneg %p131
        %p353 = pneg %p155
        %p354 = pneg %p152
        %p355 = pneg %p176
        %p356 = pneg %p173
        %p357 = pneg %p197
        %p358 = pneg %p194
        %p359 = pneg %p218
        %p360 = pneg %p215
        %p361 = pneg %p239
        %p362 = pneg %p236
        %p363 = pneg %p265
        %p364 = pneg %p262
        %s365 = sand.u32 %s252, 1
        %s366 = scalar_lea.sflag [#allocation3], %s365
        %s367 = sand.u32 %s252, 1
        %s368 = smul.addr %s367, 64
        %s369 = scalar_lea.vmem [#allocation2], %s368
        %s370 = smul.u32 8, %s24
        %p371 = scmp.lt.s32.totalorder %s370, 15
        %s372 = scalar_select %p371, %s370, 15
        %s373 = smul.addr %s372, 4
        %s374 = scalar_lea.vmem %s0, %s373
        %s375 = smul.u32 8, %s24
        %s376 = smul.u32 8, %s24
        %p377 = scmp.lt.s32.totalorder %s376, 15
        %s378 = scalar_select %p377, %s376, 15
        %s379 = smul.addr %s378, 4
        %s380 = scalar_lea.vmem %s1, %s379
        %s381 = smul.u32 8, %s24
        %s382 = smul.u32 8, %s24
        %v384 = vld [vmem:[%s374] sm:$0xf]
        %v385 = vld [vmem:[%s374 + $0x4] sm:$0xf]
        %v386 = vld [vmem:[%s374 + $0x8] sm:$0xf]
        %v387 = vld [vmem:[%s374 + $0xc] sm:$0xf]
        %v388 = vld [vmem:[%s374 + $0x10] sm:$0xf]
        %v389 = vld [vmem:[%s374 + $0x14] sm:$0xf]
        %v390 = vld [vmem:[%s374 + $0x18] sm:$0xf]
        %v391 = vld [vmem:[%s374 + $0x1c] sm:$0xf]
        %v392 = vld [vmem:[%s2] sm:$0xf]
        %v393 = vld [vmem:[%s2 + $0x4] sm:$0xf]
        %v394 = vld [vmem:[%s2 + $0x8] sm:$0xf]
        %v395 = vld [vmem:[%s2 + $0xc] sm:$0xf]
        %v396 = vld [vmem:[%s3] sm:$0x1]
        %v398 = vperm.slane %v396, 0
        %v408 = vunpack.c.l.b16 %v384
        %v409 = vunpack.c.l.b16 %v385
        %v410 = vunpack.c.l.b16 %v386
        %v411 = vunpack.c.l.b16 %v387
        %v412 = vunpack.c.l.b16 %v388
        %v413 = vunpack.c.l.b16 %v389
        %v414 = vunpack.c.l.b16 %v390
        %v415 = vunpack.c.l.b16 %v391
        %v416 = vpack.c.b16 %v409, %v408
        %v417 = vpack.c.b16 %v411, %v410
        %v418 = vpack.c.b16 %v413, %v412
        %v419 = vpack.c.b16 %v415, %v414
        %v424 = vunpack.c.l.b16 %v392
        %v425 = vunpack.c.l.b16 %v393
        %v426 = vunpack.c.l.b16 %v394
        %v427 = vunpack.c.l.b16 %v395
        %v428 = vpack.c.b16 %v425, %v424
        %v429 = vpack.c.b16 %v427, %v426
        %vm432 = vcmask 261120
        %v434 = vsel %vm432, %v416, 0
        %v437 = vsel %vm432, %v417, 0
        %v440 = vsel %vm432, %v418, 0
        %v443 = vsel %vm432, %v419, 0
        %445 = vmatpush.bf16.msra.mxu0 0
        %446 = vmatpush.bf16.msra.mxu0 0
        %447 = vmatpush.bf16.msra.mxu0 0
        %448 = vmatpush.bf16.msra.mxu0 0
        %449 = vmatpush.bf16.msra.mxu0 0
        %450 = vmatpush.bf16.msra.mxu0 0
        %451 = vmatpush.bf16.msra.mxu0 %v429
        %452 = vmatpush.bf16.msra.mxu0 %v428
        %453 = vmatmul.bf16.gmra.mxu0 %v434
        %v454 = vpop.f32.mrf.mxu0
        %v455 = vadd.f32 %v398, %v454
        %v456 = vpop.f32.mrf.mxu0
        %v457 = vadd.f32 %v398, %v456
        %458 = vmatmul.bf16.gmra.mxu0 %v437
        %v459 = vpop.f32.mrf.mxu0
        %v460 = vadd.f32 %v398, %v459
        %v461 = vpop.f32.mrf.mxu0
        %v462 = vadd.f32 %v398, %v461
        %463 = vmatmul.bf16.gmra.mxu0 %v440
        %v464 = vpop.f32.mrf.mxu0
        %v465 = vadd.f32 %v398, %v464
        %v466 = vpop.f32.mrf.mxu0
        %v467 = vadd.f32 %v398, %v466
        %468 = vmatmul.bf16.gmra.mxu0 %v443
        %v469 = vpop.f32.mrf.mxu0
        %v470 = vadd.f32 %v398, %v469
        %v471 = vpop.f32.mrf.mxu0
        %v472 = vadd.f32 %v398, %v471
        %473 = vdwg.mxu0
        %v474 = vmax.f32 %v455, 0.0
        %v475 = vmax.f32 %v457, 0.0
        %v476 = vmax.f32 %v460, 0.0
        %v477 = vmax.f32 %v462, 0.0
        %v478 = vmax.f32 %v465, 0.0
        %v479 = vmax.f32 %v467, 0.0
        %v480 = vmax.f32 %v470, 0.0
        %v481 = vmax.f32 %v472, 0.0
        %v482 = vpack.c.bf16 %v475, %v474
        %v483 = vpack.c.bf16 %v477, %v476
        %v484 = vpack.c.bf16 %v479, %v478
        %v485 = vpack.c.bf16 %v481, %v480
        %v486 = vld [vmem:[%s4] sm:$0xf]
        %v487 = vld [vmem:[%s4 + $0x4] sm:$0xf]
        %v488 = vld [vmem:[%s4 + $0x8] sm:$0xf]
        %v489 = vld [vmem:[%s4 + $0xc] sm:$0xf]
        %v490 = vld [vmem:[%s4 + $0x10] sm:$0xf]
        %v491 = vld [vmem:[%s4 + $0x14] sm:$0xf]
        %v492 = vld [vmem:[%s4 + $0x18] sm:$0xf]
        %v493 = vld [vmem:[%s4 + $0x1c] sm:$0xf]
        %v494 = vld [vmem:[%s4 + $0x20] sm:$0xf]
        %v495 = vld [vmem:[%s4 + $0x24] sm:$0xf]
        %v496 = vld [vmem:[%s4 + $0x28] sm:$0xf]
        %v497 = vld [vmem:[%s4 + $0x2c] sm:$0xf]
        %v498 = vld [vmem:[%s4 + $0x30] sm:$0xf]
        %v499 = vld [vmem:[%s4 + $0x34] sm:$0xf]
        %v500 = vld [vmem:[%s4 + $0x38] sm:$0xf]
        %v501 = vld [vmem:[%s4 + $0x3c] sm:$0xf]
        %v502 = vld [vmem:[%s5] sm:$0x1]
        %v504 = vperm.slane %v502, 0
        %v522 = vunpack.c.l.b16 %v486
        %v523 = vunpack.c.l.b16 %v487
        %v524 = vunpack.c.l.b16 %v488
        %v525 = vunpack.c.l.b16 %v489
        %v526 = vunpack.c.l.b16 %v490
        %v527 = vunpack.c.l.b16 %v491
        %v528 = vunpack.c.l.b16 %v492
        %v529 = vunpack.c.l.b16 %v493
        %v530 = vunpack.c.l.b16 %v494
        %v531 = vunpack.c.l.b16 %v495
        %v532 = vunpack.c.l.b16 %v496
        %v533 = vunpack.c.l.b16 %v497
        %v534 = vunpack.c.l.b16 %v498
        %v535 = vunpack.c.l.b16 %v499
        %v536 = vunpack.c.l.b16 %v500
        %v537 = vunpack.c.l.b16 %v501
        %v538 = vpack.c.b16 %v523, %v522
        %v539 = vpack.c.b16 %v525, %v524
        %v540 = vpack.c.b16 %v527, %v526
        %v541 = vpack.c.b16 %v529, %v528
        %v542 = vpack.c.b16 %v531, %v530
        %v543 = vpack.c.b16 %v533, %v532
        %v544 = vpack.c.b16 %v535, %v534
        %v545 = vpack.c.b16 %v537, %v536
        %554 = vmatpush.bf16.msra.mxu0 %v545
        %555 = vmatpush.bf16.msra.mxu0 %v544
        %556 = vmatpush.bf16.msra.mxu0 %v543
        %557 = vmatpush.bf16.msra.mxu0 %v542
        %558 = vmatpush.bf16.msra.mxu0 %v541
        %559 = vmatpush.bf16.msra.mxu0 %v540
        %560 = vmatpush.bf16.msra.mxu0 %v539
        %561 = vmatpush.bf16.msra.mxu0 %v538
        %562 = vmatmul.bf16.gmra.mxu0 %v482
        %v563 = vpop.f32.mrf.mxu0
        %v564 = vadd.f32 %v504, %v563
        %v565 = vpop.f32.mrf.mxu0
        %v566 = vadd.f32 %v504, %v565
        %567 = vmatmul.bf16.gmra.mxu0 %v483
        %v568 = vpop.f32.mrf.mxu0
        %v569 = vadd.f32 %v504, %v568
        %v570 = vpop.f32.mrf.mxu0
        %v571 = vadd.f32 %v504, %v570
        %572 = vmatmul.bf16.gmra.mxu0 %v484
        %v573 = vpop.f32.mrf.mxu0
        %v574 = vadd.f32 %v504, %v573
        %v575 = vpop.f32.mrf.mxu0
        %v576 = vadd.f32 %v504, %v575
        %577 = vmatmul.bf16.gmra.mxu0 %v485
        %v578 = vpop.f32.mrf.mxu0
        %v579 = vadd.f32 %v504, %v578
        %v580 = vpop.f32.mrf.mxu0
        %v581 = vadd.f32 %v504, %v580
        %582 = vdwg.mxu0
        %v583 = vld [vmem:[%s380] sm:$0xf]
        %v584 = vld [vmem:[%s380 + $0x4] sm:$0xf]
        %v585 = vld [vmem:[%s380 + $0x8] sm:$0xf]
        %v586 = vld [vmem:[%s380 + $0xc] sm:$0xf]
        %v587 = vld [vmem:[%s380 + $0x10] sm:$0xf]
        %v588 = vld [vmem:[%s380 + $0x14] sm:$0xf]
        %v589 = vld [vmem:[%s380 + $0x18] sm:$0xf]
        %v590 = vld [vmem:[%s380 + $0x1c] sm:$0xf]
        %v591 = vunpack.c.l.bf16 %v583
        %v592 = vunpack.c.l.bf16 %v584
        %v593 = vunpack.c.l.bf16 %v585
        %v594 = vunpack.c.l.bf16 %v586
        %v595 = vunpack.c.l.bf16 %v587
        %v596 = vunpack.c.l.bf16 %v588
        %v597 = vunpack.c.l.bf16 %v589
        %v598 = vunpack.c.l.bf16 %v590
        %v599 = vmul.f32 %v564, 0.5
        %v600 = vmul.f32 %v566, 0.5
        %v601 = vmul.f32 %v569, 0.5
        %v602 = vmul.f32 %v571, 0.5
        %v603 = vmul.f32 %v574, 0.5
        %v604 = vmul.f32 %v576, 0.5
        %v605 = vmul.f32 %v579, 0.5
        %v606 = vmul.f32 %v581, 0.5
        %v607 = vmul.f32 %v599, 1.442695
        %v608 = vpow.pop %v607
        %v609 = vmul.f32 %v600, 1.442695
        %v610 = vpow.pop %v609
        %v611 = vmul.f32 %v601, 1.442695
        %v612 = vpow.pop %v611
        %v613 = vmul.f32 %v602, 1.442695
        %v614 = vpow.pop %v613
        %v615 = vmul.f32 %v603, 1.442695
        %v616 = vpow.pop %v615
        %v617 = vmul.f32 %v604, 1.442695
        %v618 = vpow.pop %v617
        %v619 = vmul.f32 %v605, 1.442695
        %v620 = vpow.pop %v619
        %v621 = vmul.f32 %v606, 1.442695
        %v622 = vpow.pop %v621
        %631 = vrot.lane.b32.xlu0 %v591, 16
        %v632 = vpop.permute.xlu0 %631
        %633 = vrot.lane.b32.xlu0 %v592, 16
        %v634 = vpop.permute.xlu0 %633
        %635 = vrot.lane.b32.xlu0 %v593, 16
        %v636 = vpop.permute.xlu0 %635
        %637 = vrot.lane.b32.xlu0 %v594, 16
        %v638 = vpop.permute.xlu0 %637
        %639 = vrot.lane.b32.xlu0 %v595, 16
        %v640 = vpop.permute.xlu0 %639
        %641 = vrot.lane.b32.xlu0 %v596, 16
        %v642 = vpop.permute.xlu0 %641
        %643 = vrot.lane.b32.xlu0 %v597, 16
        %v644 = vpop.permute.xlu0 %643
        %645 = vrot.lane.b32.xlu0 %v598, 16
        %v646 = vpop.permute.xlu0 %645
        %v655 = vmul.f32 %v608, %v632
        %v656 = vmul.f32 %v610, %v634
        %v657 = vmul.f32 %v612, %v636
        %v658 = vmul.f32 %v614, %v638
        %v659 = vmul.f32 %v616, %v640
        %v660 = vmul.f32 %v618, %v642
        %v661 = vmul.f32 %v620, %v644
        %v662 = vmul.f32 %v622, %v646
        %671 = vrot.lane.b32.xlu0 %v655, 112
        %v672 = vpop.permute.xlu0 %671
        %673 = vrot.lane.b32.xlu0 %v656, 112
        %v674 = vpop.permute.xlu0 %673
        %675 = vrot.lane.b32.xlu0 %v657, 112
        %v676 = vpop.permute.xlu0 %675
        %677 = vrot.lane.b32.xlu0 %v658, 112
        %v678 = vpop.permute.xlu0 %677
        %679 = vrot.lane.b32.xlu0 %v659, 112
        %v680 = vpop.permute.xlu0 %679
        %681 = vrot.lane.b32.xlu0 %v660, 112
        %v682 = vpop.permute.xlu0 %681
        %683 = vrot.lane.b32.xlu0 %v661, 112
        %v684 = vpop.permute.xlu0 %683
        %685 = vrot.lane.b32.xlu0 %v662, 112
        %v686 = vpop.permute.xlu0 %685
        %v695 = vadd.f32 %v564, %v672
        %v696 = vadd.f32 %v566, %v674
        %v697 = vadd.f32 %v569, %v676
        %v698 = vadd.f32 %v571, %v678
        %v699 = vadd.f32 %v574, %v680
        %v700 = vadd.f32 %v576, %v682
        %v701 = vadd.f32 %v579, %v684
        %v702 = vadd.f32 %v581, %v686
        %v703 = vpack.c.bf16 %v696, %v695
        %v704 = vpack.c.bf16 %v698, %v697
        %v705 = vpack.c.bf16 %v700, %v699
        %v706 = vpack.c.bf16 %v702, %v701
        %v707 = vld [vmem:[%s6] sm:$0xf]
        %v708 = vld [vmem:[%s6 + $0x4] sm:$0xf]
        %v709 = vld [vmem:[%s7] sm:$0x1]
        %v711 = vperm.slane %v709, 0
        %v715 = vunpack.c.l.b16 %v707
        %v716 = vunpack.c.l.b16 %v708
        %v717 = vpack.c.b16 %v716, %v715
        %vm719 = vcmask 130048
        %v721 = vsel %vm719, %v703, 0
        %v724 = vsel %vm719, %v704, 0
        %v727 = vsel %vm719, %v705, 0
        %v730 = vsel %vm719, %v706, 0
        %732 = vmatpush.bf16.msra.mxu0 0
        %733 = vmatpush.bf16.msra.mxu0 0
        %734 = vmatpush.bf16.msra.mxu0 0
        %735 = vmatpush.bf16.msra.mxu0 0
        %736 = vmatpush.bf16.msra.mxu0 0
        %737 = vmatpush.bf16.msra.mxu0 0
        %738 = vmatpush.bf16.msra.mxu0 0
        %739 = vmatpush.bf16.msra.mxu0 %v717
        %740 = vmatmul.bf16.gmra.mxu0 %v721
        %v741 = vpop.f32.mrf.mxu0
        %v742 = vadd.f32 %v711, %v741
        %v743 = vpop.f32.mrf.mxu0
        %v744 = vadd.f32 %v711, %v743
        %745 = vmatmul.bf16.gmra.mxu0 %v724
        %v746 = vpop.f32.mrf.mxu0
        %v747 = vadd.f32 %v711, %v746
        %v748 = vpop.f32.mrf.mxu0
        %v749 = vadd.f32 %v711, %v748
        %750 = vmatmul.bf16.gmra.mxu0 %v727
        %v751 = vpop.f32.mrf.mxu0
        %v752 = vadd.f32 %v711, %v751
        %v753 = vpop.f32.mrf.mxu0
        %v754 = vadd.f32 %v711, %v753
        %755 = vmatmul.bf16.gmra.mxu0 %v730
        %v756 = vpop.f32.mrf.mxu0
        %v757 = vadd.f32 %v711, %v756
        %v758 = vpop.f32.mrf.mxu0
        %v759 = vadd.f32 %v711, %v758
        %760 = vdwg.mxu0
        %v761 = vmax.f32 %v742, 0.0
        %v762 = vmax.f32 %v744, 0.0
        %v763 = vmax.f32 %v747, 0.0
        %v764 = vmax.f32 %v749, 0.0
        %v765 = vmax.f32 %v752, 0.0
        %v766 = vmax.f32 %v754, 0.0
        %v767 = vmax.f32 %v757, 0.0
        %v768 = vmax.f32 %v759, 0.0
        %v769 = vpack.c.bf16 %v762, %v761
        %v770 = vpack.c.bf16 %v764, %v763
        %v771 = vpack.c.bf16 %v766, %v765
        %v772 = vpack.c.bf16 %v768, %v767
        %v773 = vld [vmem:[%s8] sm:$0xf]
        %v774 = vld [vmem:[%s8 + $0x4] sm:$0xf]
        %v775 = vld [vmem:[%s8 + $0x8] sm:$0xf]
        %v776 = vld [vmem:[%s8 + $0xc] sm:$0xf]
        %v777 = vld [vmem:[%s8 + $0x10] sm:$0xf]
        %v778 = vld [vmem:[%s8 + $0x14] sm:$0xf]
        %v779 = vld [vmem:[%s8 + $0x18] sm:$0xf]
        %v780 = vld [vmem:[%s8 + $0x1c] sm:$0xf]
        %v781 = vld [vmem:[%s8 + $0x20] sm:$0xf]
        %v782 = vld [vmem:[%s8 + $0x24] sm:$0xf]
        %v783 = vld [vmem:[%s8 + $0x28] sm:$0xf]
        %v784 = vld [vmem:[%s8 + $0x2c] sm:$0xf]
        %v785 = vld [vmem:[%s8 + $0x30] sm:$0xf]
        %v786 = vld [vmem:[%s8 + $0x34] sm:$0xf]
        %v787 = vld [vmem:[%s8 + $0x38] sm:$0xf]
        %v788 = vld [vmem:[%s8 + $0x3c] sm:$0xf]
        %v789 = vld [vmem:[%s9] sm:$0x1]
        %v791 = vperm.slane %v789, 0
        %v809 = vunpack.c.l.b16 %v773
        %v810 = vunpack.c.l.b16 %v774
        %v811 = vunpack.c.l.b16 %v775
        %v812 = vunpack.c.l.b16 %v776
        %v813 = vunpack.c.l.b16 %v777
        %v814 = vunpack.c.l.b16 %v778
        %v815 = vunpack.c.l.b16 %v779
        %v816 = vunpack.c.l.b16 %v780
        %v817 = vunpack.c.l.b16 %v781
        %v818 = vunpack.c.l.b16 %v782
        %v819 = vunpack.c.l.b16 %v783
        %v820 = vunpack.c.l.b16 %v784
        %v821 = vunpack.c.l.b16 %v785
        %v822 = vunpack.c.l.b16 %v786
        %v823 = vunpack.c.l.b16 %v787
        %v824 = vunpack.c.l.b16 %v788
        %v825 = vpack.c.b16 %v810, %v809
        %v826 = vpack.c.b16 %v812, %v811
        %v827 = vpack.c.b16 %v814, %v813
        %v828 = vpack.c.b16 %v816, %v815
        %v829 = vpack.c.b16 %v818, %v817
        %v830 = vpack.c.b16 %v820, %v819
        %v831 = vpack.c.b16 %v822, %v821
        %v832 = vpack.c.b16 %v824, %v823
        %841 = vmatpush.bf16.msra.mxu0 %v832
        %842 = vmatpush.bf16.msra.mxu0 %v831
        %843 = vmatpush.bf16.msra.mxu0 %v830
        %844 = vmatpush.bf16.msra.mxu0 %v829
        %845 = vmatpush.bf16.msra.mxu0 %v828
        %846 = vmatpush.bf16.msra.mxu0 %v827
        %847 = vmatpush.bf16.msra.mxu0 %v826
        %848 = vmatpush.bf16.msra.mxu0 %v825
        %849 = vmatmul.bf16.gmra.mxu0 %v769
        %v850 = vpop.f32.mrf.mxu0
        %v851 = vadd.f32 %v791, %v850
        %v852 = vpop.f32.mrf.mxu0
        %v853 = vadd.f32 %v791, %v852
        %854 = vmatmul.bf16.gmra.mxu0 %v770
        %v855 = vpop.f32.mrf.mxu0
        %v856 = vadd.f32 %v791, %v855
        %v857 = vpop.f32.mrf.mxu0
        %v858 = vadd.f32 %v791, %v857
        %859 = vmatmul.bf16.gmra.mxu0 %v771
        %v860 = vpop.f32.mrf.mxu0
        %v861 = vadd.f32 %v791, %v860
        %v862 = vpop.f32.mrf.mxu0
        %v863 = vadd.f32 %v791, %v862
        %864 = vmatmul.bf16.gmra.mxu0 %v772
        %v865 = vpop.f32.mrf.mxu0
        %v866 = vadd.f32 %v791, %v865
        %v867 = vpop.f32.mrf.mxu0
        %v868 = vadd.f32 %v791, %v867
        %869 = vdwg.mxu0
        %878 = vrot.lane.b32.xlu0 %v851, 32
        %v879 = vpop.permute.xlu0 %878
        %880 = vrot.lane.b32.xlu0 %v853, 32
        %v881 = vpop.permute.xlu0 %880
        %882 = vrot.lane.b32.xlu0 %v856, 32
        %v883 = vpop.permute.xlu0 %882
        %884 = vrot.lane.b32.xlu0 %v858, 32
        %v885 = vpop.permute.xlu0 %884
        %886 = vrot.lane.b32.xlu0 %v861, 32
        %v887 = vpop.permute.xlu0 %886
        %888 = vrot.lane.b32.xlu0 %v863, 32
        %v889 = vpop.permute.xlu0 %888
        %890 = vrot.lane.b32.xlu0 %v866, 32
        %v891 = vpop.permute.xlu0 %890
        %892 = vrot.lane.b32.xlu0 %v868, 32
        %v893 = vpop.permute.xlu0 %892
        %v902 = vsel %vm432, %v564, %v879
        %v903 = vsel %vm432, %v566, %v881
        %v904 = vsel %vm432, %v569, %v883
        %v905 = vsel %vm432, %v571, %v885
        %v906 = vsel %vm432, %v574, %v887
        %v907 = vsel %vm432, %v576, %v889
        %v908 = vsel %vm432, %v579, %v891
        %v909 = vsel %vm432, %v581, %v893
        %910 = vst [vmem:[%s369] sm:$0xff] %v902
        %911 = vst [vmem:[%s369 + $0x8] sm:$0xff] %v903
        %912 = vst [vmem:[%s369 + $0x10] sm:$0xff] %v904
        %913 = vst [vmem:[%s369 + $0x18] sm:$0xff] %v905
        %914 = vst [vmem:[%s369 + $0x20] sm:$0xff] %v906
        %915 = vst [vmem:[%s369 + $0x28] sm:$0xff] %v907
        %916 = vst [vmem:[%s369 + $0x30] sm:$0xff] %v908
        %917 = vst [vmem:[%s369 + $0x38] sm:$0xff] %v909
        %s918 = sand.u32 %s252, 1
        %s919 = scalar_lea.sflag [#allocation3], %s918
        %s920 = sand.u32 %s252, 1
        %s921 = smul.addr %s920, 64
        %s922 = scalar_lea.vmem [#allocation2], %s921
        // Predicated region
        $region61: #{tpu_custom_call.1} parent=59 // pred_check
          %p923 = pneg %p262
        $region62: #{tpu_custom_call.1} parent=59 // pred_check_branch
          %925 = sbr.rel (%p923) target = $region64
        $region63: #{tpu_custom_call.1} parent=59 // pred_region
          %s926 = smul.u32 8, %s24
          %928 = vsyncadd %s919, 0
          %s929 = smul.addr %s926, 8
          %s930 = scalar_lea.hbm %s10, %s929
          %s931 = sshll.u32 %s922, 4
          %s932 = int_to_ptr.vmem [resolvable:$true] %s931
          %s933 = sshll.u32 %s930, 4
          %s934 = int_to_ptr.hbm [resolvable:$true] %s933
          %939 = dma.vmem_to_hbm [thread:$0]  %s932, 1024, %s934, %s919, 128, 128, 8
        $region64: #{tpu_custom_call.1} parent=59 // pred_fallthru
          _
      $region60: #{tpu_custom_call.1} parent=5 // pred_fallthru
        _
      %p940 = scmp.le.s32.totalorder 2, %s19
      // Predicated region
      $region65: #{tpu_custom_call.1} parent=5 // pred_check
        %p941 = pneg %p940
      $region66: #{tpu_custom_call.1} parent=5 // pred_check_branch
        %943 = sbr.rel (%p941) target = $region68
      $region67: #{tpu_custom_call.1} parent=5 // pred_region
        %s944 = ssub.s32 %s19, 2
        // Predicated region
        $region69: #{tpu_custom_call.1} parent=67 // pred_check
          %p945 = pneg %p268
        $region70: #{tpu_custom_call.1} parent=67 // pred_check_branch
          %947 = sbr.rel (%p945) target = $region72
        $region71: #{tpu_custom_call.1} parent=67 // pred_region
          %s948 = sand.u32 %s253, 1
          %s949 = scalar_lea.sflag [#allocation3], %s948
          %s950 = sand.u32 %s253, 1
          %s951 = smul.addr %s950, 64
          %s952 = scalar_lea.vmem [#allocation2], %s951
          %954 = dma.done %s949, 1024
        $region72: #{tpu_custom_call.1} parent=67 // pred_fallthru
          _
      $region68: #{tpu_custom_call.1} parent=5 // pred_fallthru
        _
    $region6: #{tpu_custom_call.1} parent=1 // loop_footer
      %s23 = sadd.s32 1, %s19
    $region7: #{tpu_custom_call.1} parent=1 // loop_footer_branch
      %18 = sbr.rel target = $region3
    $region8: #{tpu_custom_call.1} parent=1 // loop_exit
      _
    %955 = vsyncpa [#allocation3], 1
    %s956 = scalar_lea.sflag [#allocation3], 1
    %957 = vsyncpa %s956, 1

</llo_original>
